<compile_context>
chip_gen: v5e
topology: v5e:2x2
jax: 0.10.0
libtpu: 0.0.40
codegen_flags: <defaults>
</compile_context>

<pallas_src>
import jax
import jax.numpy as jnp
from jax import lax
from jax.experimental import pallas as pl
from jax.experimental.pallas import tpu as pltpu


def _elu(x):
    return jnp.where(x > 0, x, jnp.exp(jnp.minimum(x, 0.0)) - 1.0)


def eegnet_kernel(x_ref,      # (B, Chans*WP1)  bf16  batch tile, time-padded, flat
                  t1_ref,     # (Chans*WP1, F1*W1) bf16  block-1 folded conv matrix
                  b1_ref,     # (1, F1*W1)      f32   block-1 folded bias
                  t2_ref,     # (F1*W1, F2*W2)  bf16  pool-4 (+pad embed) x block-2 conv
                  b3_ref,     # (1, F2*W2)      f32   block-2 folded bias
                  w3_ref,     # (F2*W2, CP)     bf16  pool-8 x linear weight, lane-padded
                  bl_ref,     # (1, CP)         f32   linear bias, padded with -1e30
                  o_ref):     # (B, CP)         f32   softmax output (lane-dense)
    f32 = jnp.float32
    bf16 = jnp.bfloat16

    # Block 1: Conv(1,K1)+BN1+depthwise(Chans,1)+pointwise+BN2 -> one MXU matmul
    h = jnp.dot(x_ref[...], t1_ref[...], preferred_element_type=f32) + b1_ref[...]
    h = _elu(h)

    # AvgPool(1,4) + Block 2 (depthwise(1,K2)+pointwise+BN3) -> one MXU matmul
    g = jnp.dot(h.astype(bf16), t2_ref[...], preferred_element_type=f32) + b3_ref[...]
    g = _elu(g)

    # AvgPool(1,8) + Flatten + Linear (lane-padded) -> one MXU matmul
    z = jnp.dot(g.astype(bf16), w3_ref[...], preferred_element_type=f32) + bl_ref[...]

    # Softmax in f32 (padded lanes carry -1e30 bias -> exp underflows to 0)
    z = z - jnp.max(z, axis=-1, keepdims=True)
    e = jnp.exp(z)
    l = jnp.sum(e, axis=-1, keepdims=True)
    o_ref[...] = (e * pl.reciprocal(l, approx=True)).astype(o_ref.dtype)


def _const_spec(a):
    nd = a.ndim
    return pl.BlockSpec(a.shape, lambda i, _nd=nd: (0,) * _nd)


def build_kernel_params(raw, cfg, Chans, Samples):
    """Fold BN/conv/pool stacks into 3 matmul operands (wrapper-side, one time)."""
    F1, D, F2 = cfg["F1"], cfg["D"], cfg["F2"]
    K1, K2, C = cfg["K1"], cfg["K2"], cfg["C"]
    P1 = K1 // 2
    P2 = max(1, K2) // 2
    WP1 = Samples + 2 * P1
    W1 = WP1 - K1 + 1
    Wp1 = W1 // 4
    WP2in = Wp1 + 2 * P2
    W2 = WP2in - K2 + 1
    Wp2 = W2 // 8
    Fin = F2 * Wp2
    CP = 128                       # lane-dense output width (>= nb_classes)
    f32 = jnp.float32
    bf16 = jnp.bfloat16

    w1, dw1, pw1 = raw["w1"], raw["dw1"], raw["pw1"]
    dw2, pw2 = raw["dw2"], raw["pw2"]
    wl, bl = raw["wl"], raw["bl"]
    s1, b1 = raw["bn1_s"], raw["bn1_b"]
    s2, b2 = raw["bn2_s"], raw["bn2_b"]
    s3, b3 = raw["bn3_s"], raw["bn3_b"]

    # ---- block 1 fold: A[o,c,k] = s2[o] * sum_j pw1[o,j]*s1[j//D]*dw1[j,c]*w1[j//D,k]
    grp = jnp.arange(F1 * D) // D
    s1j, b1j, w1j = s1[grp], b1[grp], w1[grp]
    A = jnp.einsum('oj,jc,jk->ock', pw1 * s1j[None, :], dw1, w1j)
    A = A * s2[:, None, None]                                  # (F1, Chans, K1)
    beta = s2 * (pw1 @ (b1j * dw1.sum(axis=1))) + b2           # (F1,)

    p = jnp.arange(WP1)
    t = jnp.arange(W1)
    kidx = p[:, None] - t[None, :]
    valid = (kidx >= 0) & (kidx < K1)
    band = jnp.where(valid[None, None], A[:, :, jnp.clip(kidx, 0, K1 - 1)], 0.0)
    T1 = band.transpose(1, 2, 0, 3).reshape(Chans * WP1, F1 * W1).astype(f32)
    bias1 = jnp.repeat(beta, W1)[None, :].astype(f32)

    # ---- pool-1 (window 4, floor) + zero-embed into block-2 padded layout
    tt, tp = jnp.arange(W1), jnp.arange(Wp1)
    pool1_blk = (((tt[:, None] // 4) == tp[None, :]) & (tt[:, None] < 4 * Wp1))
    pool1_blk = pool1_blk.astype(f32) / 4.0
    P1mat = jnp.zeros((F1 * W1, F1 * WP2in), f32)
    for o in range(F1):
        P1mat = P1mat.at[o * W1:(o + 1) * W1,
                         o * WP2in + P2:o * WP2in + P2 + Wp1].set(pool1_blk)

    # ---- block 2 fold: C2[q,f,k] = s3[q]*pw2[q,f]*dw2[f,k]
    C2 = s3[:, None, None] * pw2[:, :, None] * dw2[None, :, :]  # (F2, F1, K2)
    p2i, t2i = jnp.arange(WP2in), jnp.arange(W2)
    kidx2 = p2i[:, None] - t2i[None, :]
    valid2 = (kidx2 >= 0) & (kidx2 < K2)
    band2 = jnp.where(valid2[None, None], C2[:, :, jnp.clip(kidx2, 0, K2 - 1)], 0.0)
    T2 = band2.transpose(1, 2, 0, 3).reshape(F1 * WP2in, F2 * W2).astype(f32)
    bias3 = jnp.repeat(b3, W2)[None, :].astype(f32)

    # ---- pool-2 (window 8, floor)
    tt2, tq = jnp.arange(W2), jnp.arange(Wp2)
    pool2_blk = (((tt2[:, None] // 8) == tq[None, :]) & (tt2[:, None] < 8 * Wp2))
    pool2_blk = pool2_blk.astype(f32) / 8.0
    P2mat = jnp.zeros((F2 * W2, F2 * Wp2), f32)
    for q in range(F2):
        P2mat = P2mat.at[q * W2:(q + 1) * W2, q * Wp2:(q + 1) * Wp2].set(pool2_blk)

    # ---- block 3: Linear, lane-padded to CP for unmasked stores
    wl_pad = jnp.zeros((Fin, CP), f32).at[:, :C].set(wl.T)
    bl_pad = jnp.full((1, CP), -1e30, f32).at[0, :C].set(bl)

    # ---- fold the pooling matrices into the adjacent matmuls (exact; linear
    #      maps between the nonlinearities).  Folds in f32, cast at the end.
    T2p = (P1mat @ T2)                                          # (F1*W1, F2*W2)
    W3 = (P2mat @ wl_pad)                                       # (F2*W2, CP)

    kp = dict(T1=T1.astype(bf16), bias1=bias1,
              T2p=T2p.astype(bf16), bias3=bias3,
              W3=W3.astype(bf16), bl_pad=bl_pad)
    geom = dict(Chans=Chans, Samples=Samples, P1=P1, WP1=WP1, W1=W1, Wp1=Wp1,
                P2=P2, WP2in=WP2in, W2=W2, Wp2=Wp2, Fin=Fin, C=C, CP=CP)
    return kp, geom


def eegnet_forward(x4, kp, geom, *, batch_tile=256):
    """x4: (N, 1, Chans, Samples) float32 -> (N, nb_classes) softmax probs."""
    N = x4.shape[0]
    Chans, WP1, P1 = geom["Chans"], geom["WP1"], geom["P1"]
    C, CP = geom["C"], geom["CP"]

    ALIGN = 16                     # bf16 sublane packing
    B = batch_tile
    if N <= B:
        # small-N: shrink the tile so >= 2 grid steps exist when possible
        # (v7x has 2 TensorCores; the "parallel" grid axis shards across them)
        B = max(ALIGN, -(-((N + 1) // 2) // ALIGN) * ALIGN)
    B = min(B, batch_tile)
    assert B % ALIGN == 0
    n_pad = (-N) % B
    Np = N + n_pad

    # squeeze NCHW, zero-pad time by P1, pad batch to a multiple of B,
    # flatten to lane-dense slabs, cast the HBM stream to bf16
    xp = jnp.pad(x4[:, 0, :, :], ((0, n_pad), (0, 0), (P1, P1)))   # (Np, Chans, WP1)
    xflat = xp.reshape(Np, Chans * WP1).astype(jnp.bfloat16)

    weights = (kp["T1"], kp["bias1"], kp["T2p"], kp["bias3"],
               kp["W3"], kp["bl_pad"])

    in_specs = [pl.BlockSpec((B, Chans * WP1), lambda i: (i, 0))]
    in_specs += [_const_spec(a) for a in weights]

    out = pl.pallas_call(
        eegnet_kernel,
        out_shape=jax.ShapeDtypeStruct((Np, CP), jnp.float32),
        grid_spec=pltpu.PrefetchScalarGridSpec(
            num_scalar_prefetch=0,
            grid=(Np // B,),
            in_specs=in_specs,
            out_specs=pl.BlockSpec((B, CP), lambda i: (i, 0)),
        ),
        compiler_params=pltpu.CompilerParams(
            dimension_semantics=("parallel",)),
    )(xflat, *weights)
    return out[:N, :C]


def reference_forward(x4, raw, cfg):
    """Pure-JAX f32 reference replicating the PyTorch forward (eval mode)."""
    F1, D, F2, K1, K2 = cfg["F1"], cfg["D"], cfg["F2"], cfg["K1"], cfg["K2"]
    P1, P2 = K1 // 2, max(1, K2) // 2
    dn = ("NCHW", "OIHW", "NCHW")

    def elu(v):
        return jnp.where(v > 0, v, jnp.exp(jnp.minimum(v, 0.0)) - 1.0)

    def bn(v, s, b):
        return v * s[None, :, None, None] + b[None, :, None, None]

    def pool_w(v, win):
        n, c, h, w = v.shape
        wt = (w // win) * win
        return v[..., :wt].reshape(n, c, h, wt // win, win).mean(-1)

    y = lax.conv_general_dilated(x4, raw["w1"][:, None, None, :], (1, 1),
                                 ((0, 0), (P1, P1)), dimension_numbers=dn)
    y = bn(y, raw["bn1_s"], raw["bn1_b"])
    y = lax.conv_general_dilated(y, raw["dw1"][:, None, :, None], (1, 1),
                                 ((0, 0), (0, 0)), dimension_numbers=dn,
                                 feature_group_count=F1)
    y = lax.conv_general_dilated(y, raw["pw1"][:, :, None, None], (1, 1),
                                 ((0, 0), (0, 0)), dimension_numbers=dn)
    y = pool_w(elu(bn(y, raw["bn2_s"], raw["bn2_b"])), 4)

    y = lax.conv_general_dilated(y, raw["dw2"][:, None, None, :], (1, 1),
                                 ((0, 0), (P2, P2)), dimension_numbers=dn,
                                 feature_group_count=F1)
    y = lax.conv_general_dilated(y, raw["pw2"][:, :, None, None], (1, 1),
                                 ((0, 0), (0, 0)), dimension_numbers=dn)
    y = pool_w(elu(bn(y, raw["bn3_s"], raw["bn3_b"])), 8)

    feat = y.reshape(y.shape[0], -1)
    z = feat @ raw["wl"].T + raw["bl"]
    return jax.nn.softmax(z, axis=1)


if __name__ == "__main__":
    # Small EEGNet config (consistent with the module's constructor arguments).
    N, Chans, Samples = 48, 8, 32
    F1, D, F2, K1 = 4, 2, 8, 16          # kernLength=16, depth_multiplier=2
    K2 = 16                              # block2 depthwise kernel (fixed in module)
    C = 4                                # nb_classes
    eps = 1e-5
    cfg = dict(F1=F1, D=D, F2=F2, K1=K1, K2=K2, C=C)

    key = jax.random.PRNGKey(0)
    keys = jax.random.split(key, 12)

    def u(k, shape, scale):
        return jax.random.uniform(k, shape, jnp.float32, -scale, scale)

    # geometry for the final Linear fan-in
    P1 = K1 // 2
    W1 = Samples + 2 * P1 - K1 + 1
    Wp1 = W1 // 4
    P2 = max(1, K2) // 2
    W2 = Wp1 + 2 * P2 - K2 + 1
    Wp2 = W2 // 8
    Fin = F2 * Wp2                       # == F2 * floor((floor((Samples+1)/4)+1)/8)

    # raw parameters (deterministic, synthetic)
    w1 = u(keys[0], (F1, K1), (6.0 / K1) ** 0.5)              # Conv2d(1,F1,(1,K1))
    dw1 = u(keys[1], (F1 * D, Chans), (6.0 / Chans) ** 0.5)   # depthwise (Chans,1)
    pw1 = u(keys[2], (F1, F1 * D), (6.0 / (F1 * D)) ** 0.5)   # pointwise
    dw2 = u(keys[3], (F1, K2), (6.0 / K2) ** 0.5)             # depthwise (1,K2)
    pw2 = u(keys[4], (F2, F1), (6.0 / F1) ** 0.5)             # pointwise
    wl = u(keys[5], (C, Fin), (6.0 / Fin) ** 0.5)             # Linear
    bl = u(keys[6], (C,), 0.1)

    def bn_params(k, nchan):
        k1, k2, k3, k4 = jax.random.split(k, 4)
        gamma = jax.random.uniform(k1, (nchan,), jnp.float32, 0.5, 1.5)
        beta = jax.random.uniform(k2, (nchan,), jnp.float32, -0.1, 0.1)
        mean = jax.random.uniform(k3, (nchan,), jnp.float32, -0.1, 0.1)
        var = jax.random.uniform(k4, (nchan,), jnp.float32, 0.5, 1.5)
        scale = gamma / jnp.sqrt(var + eps)
        shift = beta - mean * scale
        return scale, shift

    bn1_s, bn1_b = bn_params(keys[7], F1)
    bn2_s, bn2_b = bn_params(keys[8], F1)
    bn3_s, bn3_b = bn_params(keys[9], F2)

    raw = dict(w1=w1, dw1=dw1, pw1=pw1, dw2=dw2, pw2=pw2, wl=wl, bl=bl,
               bn1_s=bn1_s, bn1_b=bn1_b, bn2_s=bn2_s, bn2_b=bn2_b,
               bn3_s=bn3_s, bn3_b=bn3_b)

    # wrapper-side operator materialization (conv/BN/pool folding, bf16 cast)
    kp, geom = build_kernel_params(raw, cfg, Chans, Samples)

    # input (PyTorch NCHW): (N, 1, Chans, Samples)
    x = jax.random.normal(keys[10], (N, 1, Chans, Samples), jnp.float32)

    out = eegnet_forward(x, kp, geom)
    out = jax.block_until_ready(out)

    ref = jax.block_until_ready(reference_forward(x, raw, cfg))

    assert out.shape == (N, C)
    assert bool(jnp.all(jnp.isfinite(out)))
    # approx-reciprocal softmax: rows sum to ~1
    assert float(jnp.max(jnp.abs(jnp.sum(out, axis=1) - 1.0))) < 5e-3
    # bf16 matmul operands (f32 accumulation) vs pure-f32 reference
    assert float(jnp.max(jnp.abs(out - ref))) < 3e-2, "mismatch vs pure-JAX reference"

    print("KERNEL_OK")
</pallas_src>

<mosaic_0001>
module attributes {stable_mosaic.version = 11 : i64} {
  func.func @eegnet_kernel(%arg0: i32, %arg1: memref<32x384xbf16, #tpu.memory_space<vmem>>, %arg2: memref<384x132xbf16, #tpu.memory_space<vmem>>, %arg3: memref<1x132xf32, #tpu.memory_space<vmem>>, %arg4: memref<132x72xbf16, #tpu.memory_space<vmem>>, %arg5: memref<1x72xf32, #tpu.memory_space<vmem>>, %arg6: memref<72x128xbf16, #tpu.memory_space<vmem>>, %arg7: memref<1x128xf32, #tpu.memory_space<vmem>>, %arg8: memref<32x128xf32, #tpu.memory_space<vmem>>) attributes {dimension_semantics = [#tpu.dimension_semantics<parallel>], iteration_bounds = array<i64: 2>, scalar_prefetch = 0 : i64, scratch_operands = 0 : i64, tpu.core_type = #tpu.core_type<tc>, window_params = [{transform_indices = @transform_0, window_bounds = array<i64: 32, 384>}, {pipeline_mode = #tpu.pipeline_mode<synchronous>, transform_indices = @transform_1, window_bounds = array<i64: 384, 132>}, {pipeline_mode = #tpu.pipeline_mode<synchronous>, transform_indices = @transform_2, window_bounds = array<i64: 1, 132>}, {pipeline_mode = #tpu.pipeline_mode<synchronous>, transform_indices = @transform_3, window_bounds = array<i64: 132, 72>}, {pipeline_mode = #tpu.pipeline_mode<synchronous>, transform_indices = @transform_4, window_bounds = array<i64: 1, 72>}, {pipeline_mode = #tpu.pipeline_mode<synchronous>, transform_indices = @transform_5, window_bounds = array<i64: 72, 128>}, {pipeline_mode = #tpu.pipeline_mode<synchronous>, transform_indices = @transform_6, window_bounds = array<i64: 1, 128>}, {transform_indices = @transform_7, window_bounds = array<i64: 32, 128>}]} {
    %c0 = arith.constant 0 : index
    %c0_0 = arith.constant 0 : index
    %0 = vector.load %arg1[%c0, %c0_0] : memref<32x384xbf16, #tpu.memory_space<vmem>>, vector<32x384xbf16>
    %c0_1 = arith.constant 0 : index
    %c0_2 = arith.constant 0 : index
    %1 = vector.load %arg2[%c0_1, %c0_2] : memref<384x132xbf16, #tpu.memory_space<vmem>>, vector<384x132xbf16>
    %cst = arith.constant dense<0.000000e+00> : vector<32x132xf32>
    %2 = tpu.matmul %0, %1, %cst {dimension_numbers = #tpu.dot_dimension_numbers<[1], [0], [0], [1], [0, 0, 1, 1], [], []>} : vector<32x384xbf16>, vector<384x132xbf16>, vector<32x132xf32> -> vector<32x132xf32>
    %c0_3 = arith.constant 0 : index
    %c0_4 = arith.constant 0 : index
    %3 = vector.load %arg3[%c0_3, %c0_4] : memref<1x132xf32, #tpu.memory_space<vmem>>, vector<1x132xf32>
    %4 = vector.broadcast %3 : vector<1x132xf32> to vector<32x132xf32>
    %5 = arith.addf %2, %4 : vector<32x132xf32>
    %cst_5 = arith.constant 0.000000e+00 : f32
    %6 = vector.broadcast %cst_5 : f32 to vector<32x132xf32>
    %7 = arith.cmpf ogt, %5, %6 : vector<32x132xf32>
    %cst_6 = arith.constant 0.000000e+00 : f32
    %8 = vector.broadcast %cst_6 : f32 to vector<32x132xf32>
    %9 = arith.minimumf %5, %8 : vector<32x132xf32>
    %10 = math.exp %9 : vector<32x132xf32>
    %cst_7 = arith.constant 1.000000e+00 : f32
    %11 = vector.broadcast %cst_7 : f32 to vector<32x132xf32>
    %12 = arith.subf %10, %11 : vector<32x132xf32>
    %13 = arith.select %7, %5, %12 : vector<32x132xi1>, vector<32x132xf32>
    %14 = arith.truncf %13 : vector<32x132xf32> to vector<32x132xbf16>
    %c0_8 = arith.constant 0 : index
    %c0_9 = arith.constant 0 : index
    %15 = vector.load %arg4[%c0_8, %c0_9] : memref<132x72xbf16, #tpu.memory_space<vmem>>, vector<132x72xbf16>
    %cst_10 = arith.constant dense<0.000000e+00> : vector<32x72xf32>
    %16 = tpu.matmul %14, %15, %cst_10 {dimension_numbers = #tpu.dot_dimension_numbers<[1], [0], [0], [1], [0, 0, 1, 1], [], []>} : vector<32x132xbf16>, vector<132x72xbf16>, vector<32x72xf32> -> vector<32x72xf32>
    %c0_11 = arith.constant 0 : index
    %c0_12 = arith.constant 0 : index
    %17 = vector.load %arg5[%c0_11, %c0_12] : memref<1x72xf32, #tpu.memory_space<vmem>>, vector<1x72xf32>
    %18 = vector.broadcast %17 : vector<1x72xf32> to vector<32x72xf32>
    %19 = arith.addf %16, %18 : vector<32x72xf32>
    %cst_13 = arith.constant 0.000000e+00 : f32
    %20 = vector.broadcast %cst_13 : f32 to vector<32x72xf32>
    %21 = arith.cmpf ogt, %19, %20 : vector<32x72xf32>
    %cst_14 = arith.constant 0.000000e+00 : f32
    %22 = vector.broadcast %cst_14 : f32 to vector<32x72xf32>
    %23 = arith.minimumf %19, %22 : vector<32x72xf32>
    %24 = math.exp %23 : vector<32x72xf32>
    %cst_15 = arith.constant 1.000000e+00 : f32
    %25 = vector.broadcast %cst_15 : f32 to vector<32x72xf32>
    %26 = arith.subf %24, %25 : vector<32x72xf32>
    %27 = arith.select %21, %19, %26 : vector<32x72xi1>, vector<32x72xf32>
    %28 = arith.truncf %27 : vector<32x72xf32> to vector<32x72xbf16>
    %c0_16 = arith.constant 0 : index
    %c0_17 = arith.constant 0 : index
    %29 = vector.load %arg6[%c0_16, %c0_17] : memref<72x128xbf16, #tpu.memory_space<vmem>>, vector<72x128xbf16>
    %cst_18 = arith.constant dense<0.000000e+00> : vector<32x128xf32>
    %30 = tpu.matmul %28, %29, %cst_18 {dimension_numbers = #tpu.dot_dimension_numbers<[1], [0], [0], [1], [0, 0, 1, 1], [], []>} : vector<32x72xbf16>, vector<72x128xbf16>, vector<32x128xf32> -> vector<32x128xf32>
    %c0_19 = arith.constant 0 : index
    %c0_20 = arith.constant 0 : index
    %31 = vector.load %arg7[%c0_19, %c0_20] : memref<1x128xf32, #tpu.memory_space<vmem>>, vector<1x128xf32>
    %32 = vector.broadcast %31 : vector<1x128xf32> to vector<32x128xf32>
    %33 = arith.addf %30, %32 : vector<32x128xf32>
    %cst_21 = arith.constant dense<0xFF800000> : vector<32xf32>
    %34 = vector.multi_reduction <maximumf>, %33, %cst_21 [1] : vector<32x128xf32> to vector<32xf32>
    %35 = vector.shape_cast %34 : vector<32xf32> to vector<32x1xf32>
    %36 = vector.broadcast %35 : vector<32x1xf32> to vector<32x128xf32>
    %37 = arith.subf %33, %36 : vector<32x128xf32>
    %38 = math.exp %37 : vector<32x128xf32>
    %cst_22 = arith.constant dense<0.000000e+00> : vector<32xf32>
    %39 = vector.multi_reduction <add>, %38, %cst_22 [1] : vector<32x128xf32> to vector<32xf32>
    %40 = vector.shape_cast %39 : vector<32xf32> to vector<32x1xf32>
    %41 = tpu.reciprocal %40 {approx = true} : vector<32x1xf32> -> vector<32x1xf32>
    %42 = vector.broadcast %41 : vector<32x1xf32> to vector<32x128xf32>
    %43 = arith.mulf %38, %42 : vector<32x128xf32>
    %c0_23 = arith.constant 0 : index
    %c0_24 = arith.constant 0 : index
    %44 = vector.load %arg8[%c0_23, %c0_24] : memref<32x128xf32, #tpu.memory_space<vmem>>, vector<32x128xf32>
    tpu.vector_store %arg8[%c0_23, %c0_24], %43 {strides = array<i32>} : memref<32x128xf32, #tpu.memory_space<vmem>>, vector<32x128xf32>,
    return
  }
  func.func @transform_0(%arg0: i32) -> (i32, i32) {
    %c0_i32 = arith.constant 0 : i32
    %c0_i32_0 = arith.constant 0 : i32
    return %arg0, %c0_i32 : i32, i32
  }
  func.func @transform_1(%arg0: i32) -> (i32, i32) {
    %c0_i32 = arith.constant 0 : i32
    %c0_i32_0 = arith.constant 0 : i32
    %c0_i32_1 = arith.constant 0 : i32
    return %c0_i32, %c0_i32_0 : i32, i32
  }
  func.func @transform_2(%arg0: i32) -> (i32, i32) {
    %c0_i32 = arith.constant 0 : i32
    %c0_i32_0 = arith.constant 0 : i32
    %c0_i32_1 = arith.constant 0 : i32
    return %c0_i32, %c0_i32_0 : i32, i32
  }
  func.func @transform_3(%arg0: i32) -> (i32, i32) {
    %c0_i32 = arith.constant 0 : i32
    %c0_i32_0 = arith.constant 0 : i32
    %c0_i32_1 = arith.constant 0 : i32
    return %c0_i32, %c0_i32_0 : i32, i32
  }
  func.func @transform_4(%arg0: i32) -> (i32, i32) {
    %c0_i32 = arith.constant 0 : i32
    %c0_i32_0 = arith.constant 0 : i32
    %c0_i32_1 = arith.constant 0 : i32
    return %c0_i32, %c0_i32_0 : i32, i32
  }
  func.func @transform_5(%arg0: i32) -> (i32, i32) {
    %c0_i32 = arith.constant 0 : i32
    %c0_i32_0 = arith.constant 0 : i32
    %c0_i32_1 = arith.constant 0 : i32
    return %c0_i32, %c0_i32_0 : i32, i32
  }
  func.func @transform_6(%arg0: i32) -> (i32, i32) {
    %c0_i32 = arith.constant 0 : i32
    %c0_i32_0 = arith.constant 0 : i32
    %c0_i32_1 = arith.constant 0 : i32
    return %c0_i32, %c0_i32_0 : i32, i32
  }
  func.func @transform_7(%arg0: i32) -> (i32, i32) {
    %c0_i32 = arith.constant 0 : i32
    %c0_i32_0 = arith.constant 0 : i32
    return %arg0, %c0_i32 : i32, i32
  }
}

</mosaic_0001>

<llo_original>
// kernel: tpu_custom_call.1
$region0: #{tpu_custom_call.1}
  #allocation0 [shape = 'u32[]', space=smem, size = 0x4, offset = 0x4, fixed_abs, tag = 'smem constant byte address 0x4 - core index']
  #allocation1 [shape = 'u32[72,128]{1,0:T(1,128)}', space=vmem, size = 0x9000, scoped, tag = 'internal scratch']
  %s0 = inlined_call_operand.vmem [shape: bf16[64,384], index: 0, kind: input, shape index: {}]
  %s1 = inlined_call_operand.vmem [shape: bf16[384,132], index: 1, kind: input, shape index: {}]
  %s2 = inlined_call_operand.vmem [shape: f32[1,132], index: 2, kind: input, shape index: {}]
  %s3 = inlined_call_operand.vmem [shape: bf16[132,72], index: 3, kind: input, shape index: {}]
  %s4 = inlined_call_operand.vmem [shape: f32[1,72], index: 4, kind: input, shape index: {}]
  %s5 = inlined_call_operand.vmem [shape: bf16[72,128], index: 5, kind: input, shape index: {}]
  %s6 = inlined_call_operand.vmem [shape: f32[1,128], index: 6, kind: input, shape index: {}]
  %s7 = inlined_call_operand.hbm [shape: f32[64,128], index: 7, kind: output, shape index: {}]
  %s8 = sld [smem:[#allocation0]]
  $region61: #{tpu_custom_call.1} parent=0
    _
  %s10 = ssub.s32 1, %s8
  %s11 = scalar_select 0, %s10, %s8
  $region1: #{tpu_custom_call.1} parent=0
    #allocation2 [shape = 'u8[32768]{0}', space=vmem, size = 0x8000, scoped, tag = 'output window, operand 0']
    #allocation3 [shape = 's32[2]{0}', space=sflag, size = 0x8, scoped, tag = 'scoped memory for tpu_custom_call.1']
    %12 = vsyncpa [#allocation3], 0
    %s13 = scalar_lea.sflag [#allocation3], 1
    %14 = vsyncpa %s13, 0
    loop: start=0, step=1, limit=4
    $region2: #{tpu_custom_call.1} parent=1 // loop_pre_header
      _
    $region3: #{tpu_custom_call.1} parent=1 // loop_header
      %s16 = sphi 0, %s20
      %p17 = scmp.ge.s32.totalorder %s16, 4
      %s26 = sphi 0, %s28
      %s29 = sphi 0, %s26
      %s30 = sphi 0, %s29
      %s46 = sphi 0, %s30
      %s50 = sphi 0, %s50
      %s52 = sphi 0, %s50
      %s53 = sphi 0, %s52
      %s67 = sphi 0, %s53
      %s71 = sphi 0, %s71
      %s73 = sphi 0, %s71
      %s74 = sphi 0, %s73
      %s88 = sphi 0, %s74
      %s92 = sphi 0, %s92
      %s94 = sphi 0, %s92
      %s95 = sphi 0, %s94
      %s109 = sphi 0, %s95
      %s113 = sphi 0, %s113
      %s115 = sphi 0, %s113
      %s116 = sphi 0, %s115
      %s130 = sphi 0, %s116
      %s134 = sphi 0, %s134
      %s136 = sphi 0, %s134
      %s137 = sphi 0, %s136
      %s151 = sphi 0, %s137
      %s155 = sphi 0, %s155
      %s157 = sphi 0, %s155
      %s158 = sphi 0, %s157
      %s172 = sphi 0, %s158
      %s178 = sphi 0, %s180
      %s181 = sphi 0, %s178
      %s182 = sphi 0, %s181
      %s198 = sphi 0, %s182
    $region4: #{tpu_custom_call.1} parent=1 // loop_header_branch
      %19 = sbr.rel (%p17) target = $region8
    $region5: #{tpu_custom_call.1} parent=1 // loop_body
      %s21 = ssub.s32 %s16, 1
      %s22 = ssub.s32 %s16, 2
      %s23 = sadd.s32 %s16, 1
      %s24 = ssub.s32 %s16, %s23
      %p25 = scmp.eq.s32.totalorder %s24, 0
      %s27 = sadd.s32 %s26, 1
      %s28 = scalar_select %p25, %s26, %s27
      %p31 = pneg %p25
      %p32 = scmp.eq.s32.totalorder %s16, 1
      %p33 = por %p31, %p32
      %p34 = scmp.ne.s32.totalorder %s26, %s29
      %p35 = scmp.eq.s32.totalorder %s16, 0
      %p36 = por %p34, %p35
      %p37 = scmp.ne.s32.totalorder %s26, %s29
      %p38 = scmp.eq.s32.totalorder %s21, 1
      %p39 = por %p37, %p38
      %p40 = scmp.ne.s32.totalorder %s29, %s30
      %p41 = scmp.eq.s32.totalorder %s21, 0
      %p42 = por %p40, %p41
      %p43 = scmp.ne.s32.totalorder %s29, %s30
      %p44 = scmp.eq.s32.totalorder %s22, 1
      %p45 = por %p43, %p44
      %p47 = scmp.ne.s32.totalorder %s30, %s46
      %p48 = scmp.eq.s32.totalorder %s22, 0
      %p49 = por %p47, %p48
      %s51 = sadd.s32 %s50, 1
      %p54 = scmp.eq.s32.totalorder %s16, 1
      %p55 = scmp.ne.s32.totalorder %s50, %s52
      %p56 = scmp.eq.s32.totalorder %s16, 0
      %p57 = por %p55, %p56
      %p58 = scmp.ne.s32.totalorder %s50, %s52
      %p59 = scmp.eq.s32.totalorder %s21, 1
      %p60 = por %p58, %p59
      %p61 = scmp.ne.s32.totalorder %s52, %s53
      %p62 = scmp.eq.s32.totalorder %s21, 0
      %p63 = por %p61, %p62
      %p64 = scmp.ne.s32.totalorder %s52, %s53
      %p65 = scmp.eq.s32.totalorder %s22, 1
      %p66 = por %p64, %p65
      %p68 = scmp.ne.s32.totalorder %s53, %s67
      %p69 = scmp.eq.s32.totalorder %s22, 0
      %p70 = por %p68, %p69
      %s72 = sadd.s32 %s71, 1
      %p75 = scmp.eq.s32.totalorder %s16, 1
      %p76 = scmp.ne.s32.totalorder %s71, %s73
      %p77 = scmp.eq.s32.totalorder %s16, 0
      %p78 = por %p76, %p77
      %p79 = scmp.ne.s32.totalorder %s71, %s73
      %p80 = scmp.eq.s32.totalorder %s21, 1
      %p81 = por %p79, %p80
      %p82 = scmp.ne.s32.totalorder %s73, %s74
      %p83 = scmp.eq.s32.totalorder %s21, 0
      %p84 = por %p82, %p83
      %p85 = scmp.ne.s32.totalorder %s73, %s74
      %p86 = scmp.eq.s32.totalorder %s22, 1
      %p87 = por %p85, %p86
      %p89 = scmp.ne.s32.totalorder %s74, %s88
      %p90 = scmp.eq.s32.totalorder %s22, 0
      %p91 = por %p89, %p90
      %s93 = sadd.s32 %s92, 1
      %p96 = scmp.eq.s32.totalorder %s16, 1
      %p97 = scmp.ne.s32.totalorder %s92, %s94
      %p98 = scmp.eq.s32.totalorder %s16, 0
      %p99 = por %p97, %p98
      %p100 = scmp.ne.s32.totalorder %s92, %s94
      %p101 = scmp.eq.s32.totalorder %s21, 1
      %p102 = por %p100, %p101
      %p103 = scmp.ne.s32.totalorder %s94, %s95
      %p104 = scmp.eq.s32.totalorder %s21, 0
      %p105 = por %p103, %p104
      %p106 = scmp.ne.s32.totalorder %s94, %s95
      %p107 = scmp.eq.s32.totalorder %s22, 1
      %p108 = por %p106, %p107
      %p110 = scmp.ne.s32.totalorder %s95, %s109
      %p111 = scmp.eq.s32.totalorder %s22, 0
      %p112 = por %p110, %p111
      %s114 = sadd.s32 %s113, 1
      %p117 = scmp.eq.s32.totalorder %s16, 1
      %p118 = scmp.ne.s32.totalorder %s113, %s115
      %p119 = scmp.eq.s32.totalorder %s16, 0
      %p120 = por %p118, %p119
      %p121 = scmp.ne.s32.totalorder %s113, %s115
      %p122 = scmp.eq.s32.totalorder %s21, 1
      %p123 = por %p121, %p122
      %p124 = scmp.ne.s32.totalorder %s115, %s116
      %p125 = scmp.eq.s32.totalorder %s21, 0
      %p126 = por %p124, %p125
      %p127 = scmp.ne.s32.totalorder %s115, %s116
      %p128 = scmp.eq.s32.totalorder %s22, 1
      %p129 = por %p127, %p128
      %p131 = scmp.ne.s32.totalorder %s116, %s130
      %p132 = scmp.eq.s32.totalorder %s22, 0
      %p133 = por %p131, %p132
      %s135 = sadd.s32 %s134, 1
      %p138 = scmp.eq.s32.totalorder %s16, 1
      %p139 = scmp.ne.s32.totalorder %s134, %s136
      %p140 = scmp.eq.s32.totalorder %s16, 0
      %p141 = por %p139, %p140
      %p142 = scmp.ne.s32.totalorder %s134, %s136
      %p143 = scmp.eq.s32.totalorder %s21, 1
      %p144 = por %p142, %p143
      %p145 = scmp.ne.s32.totalorder %s136, %s137
      %p146 = scmp.eq.s32.totalorder %s21, 0
      %p147 = por %p145, %p146
      %p148 = scmp.ne.s32.totalorder %s136, %s137
      %p149 = scmp.eq.s32.totalorder %s22, 1
      %p150 = por %p148, %p149
      %p152 = scmp.ne.s32.totalorder %s137, %s151
      %p153 = scmp.eq.s32.totalorder %s22, 0
      %p154 = por %p152, %p153
      %s156 = sadd.s32 %s155, 1
      %p159 = scmp.eq.s32.totalorder %s16, 1
      %p160 = scmp.ne.s32.totalorder %s155, %s157
      %p161 = scmp.eq.s32.totalorder %s16, 0
      %p162 = por %p160, %p161
      %p163 = scmp.ne.s32.totalorder %s155, %s157
      %p164 = scmp.eq.s32.totalorder %s21, 1
      %p165 = por %p163, %p164
      %p166 = scmp.ne.s32.totalorder %s157, %s158
      %p167 = scmp.eq.s32.totalorder %s21, 0
      %p168 = por %p166, %p167
      %p169 = scmp.ne.s32.totalorder %s157, %s158
      %p170 = scmp.eq.s32.totalorder %s22, 1
      %p171 = por %p169, %p170
      %p173 = scmp.ne.s32.totalorder %s158, %s172
      %p174 = scmp.eq.s32.totalorder %s22, 0
      %p175 = por %p173, %p174
      %s176 = ssub.s32 %s16, %s23
      %p177 = scmp.eq.s32.totalorder %s176, 0
      %s179 = sadd.s32 %s178, 1
      %s180 = scalar_select %p177, %s178, %s179
      %p183 = pneg %p177
      %p184 = scmp.eq.s32.totalorder %s16, 1
      %p185 = por %p183, %p184
      %p186 = scmp.ne.s32.totalorder %s178, %s181
      %p187 = scmp.eq.s32.totalorder %s16, 0
      %p188 = por %p186, %p187
      %p189 = scmp.ne.s32.totalorder %s178, %s181
      %p190 = scmp.eq.s32.totalorder %s21, 1
      %p191 = por %p189, %p190
      %p192 = scmp.ne.s32.totalorder %s181, %s182
      %p193 = scmp.eq.s32.totalorder %s21, 0
      %p194 = por %p192, %p193
      %p195 = scmp.ne.s32.totalorder %s181, %s182
      %p196 = scmp.eq.s32.totalorder %s22, 1
      %p197 = por %p195, %p196
      %p199 = scmp.ne.s32.totalorder %s182, %s198
      %p200 = scmp.eq.s32.totalorder %s22, 0
      %p201 = por %p199, %p200
      %p202 = scmp.le.s32.totalorder 1, %s16
      %p203 = scmp.lt.s32.totalorder %s16, 3
      %p204 = pnand %p202, %p203
      %p205 = pneg %p204
      // Predicated region
      $region9: #{tpu_custom_call.1} parent=5 // pred_check
        _
      $region10: #{tpu_custom_call.1} parent=5 // pred_check_branch
        %207 = sbr.rel (%p204) target = $region12
      $region11: #{tpu_custom_call.1} parent=5 // pred_region
        %s208 = ssub.s32 %s16, 1
        // Predicated region
        $region13: #{tpu_custom_call.1} parent=11 // pred_check
          %p209 = pneg %p63
        $region14: #{tpu_custom_call.1} parent=11 // pred_check_branch
          %211 = sbr.rel (%p209) target = $region16
        $region15: #{tpu_custom_call.1} parent=11 // pred_region
          _
        $region16: #{tpu_custom_call.1} parent=11 // pred_fallthru
          _
        // Predicated region
        $region17: #{tpu_custom_call.1} parent=11 // pred_check
          %p212 = pneg %p84
        $region18: #{tpu_custom_call.1} parent=11 // pred_check_branch
          %214 = sbr.rel (%p212) target = $region20
        $region19: #{tpu_custom_call.1} parent=11 // pred_region
          _
        $region20: #{tpu_custom_call.1} parent=11 // pred_fallthru
          _
        // Predicated region
        $region21: #{tpu_custom_call.1} parent=11 // pred_check
          %p215 = pneg %p105
        $region22: #{tpu_custom_call.1} parent=11 // pred_check_branch
          %217 = sbr.rel (%p215) target = $region24
        $region23: #{tpu_custom_call.1} parent=11 // pred_region
          _
        $region24: #{tpu_custom_call.1} parent=11 // pred_fallthru
          _
        // Predicated region
        $region25: #{tpu_custom_call.1} parent=11 // pred_check
          %p218 = pneg %p126
        $region26: #{tpu_custom_call.1} parent=11 // pred_check_branch
          %220 = sbr.rel (%p218) target = $region28
        $region27: #{tpu_custom_call.1} parent=11 // pred_region
          _
        $region28: #{tpu_custom_call.1} parent=11 // pred_fallthru
          _
        // Predicated region
        $region29: #{tpu_custom_call.1} parent=11 // pred_check
          %p221 = pneg %p147
        $region30: #{tpu_custom_call.1} parent=11 // pred_check_branch
          %223 = sbr.rel (%p221) target = $region32
        $region31: #{tpu_custom_call.1} parent=11 // pred_region
          _
        $region32: #{tpu_custom_call.1} parent=11 // pred_fallthru
          _
        // Predicated region
        $region33: #{tpu_custom_call.1} parent=11 // pred_check
          %p224 = pneg %p168
        $region34: #{tpu_custom_call.1} parent=11 // pred_check_branch
          %226 = sbr.rel (%p224) target = $region36
        $region35: #{tpu_custom_call.1} parent=11 // pred_region
          _
        $region36: #{tpu_custom_call.1} parent=11 // pred_fallthru
          _
      $region12: #{tpu_custom_call.1} parent=5 // pred_fallthru
        _
      %p227 = scmp.lt.s32.totalorder %s16, 2
      // Predicated region
      $region37: #{tpu_custom_call.1} parent=5 // pred_check
        %p228 = pneg %p227
      $region38: #{tpu_custom_call.1} parent=5 // pred_check_branch
        %230 = sbr.rel (%p228) target = $region40
      $region39: #{tpu_custom_call.1} parent=5 // pred_region
        // Predicated region
        $region41: #{tpu_custom_call.1} parent=39 // pred_check
          %p231 = pneg %p36
        $region42: #{tpu_custom_call.1} parent=39 // pred_check_branch
          %233 = sbr.rel (%p231) target = $region44
        $region43: #{tpu_custom_call.1} parent=39 // pred_region
          %s234 = smul.u32 4, %s16
          %p235 = scmp.lt.s32.totalorder %s234, 7
          %s236 = scalar_select %p235, %s234, 7
          %s237 = smul.addr %s236, 3
          %s238 = smul.addr %s237, 4
          %s239 = scalar_lea.vmem %s0, %s238
          %s240 = smul.u32 4, %s16
        $region44: #{tpu_custom_call.1} parent=39 // pred_fallthru
          _
      $region40: #{tpu_custom_call.1} parent=5 // pred_fallthru
        _
      %p241 = scmp.le.s32.totalorder 1, %s16
      %p242 = scmp.lt.s32.totalorder %s16, 3
      %p243 = pnand %p241, %p242
      %p244 = pneg %p243
      // Predicated region
      $region45: #{tpu_custom_call.1} parent=5 // pred_check
        _
      $region46: #{tpu_custom_call.1} parent=5 // pred_check_branch
        %246 = sbr.rel (%p243) target = $region48
      $region47: #{tpu_custom_call.1} parent=5 // pred_region
        %s247 = ssub.s32 %s16, 1
        %s248 = smul.u32 4, %s21
        %p249 = scmp.lt.s32.totalorder %s248, 7
        %s250 = scalar_select %p249, %s248, 7
        %s251 = smul.addr %s250, 3
        %s252 = smul.addr %s251, 4
        %s253 = scalar_lea.vmem %s0, %s252
        %p254 = pneg %p42
        %p255 = pneg %p39
        %p256 = pneg %p63
        %p257 = pneg %p60
        %p258 = pneg %p84
        %p259 = pneg %p81
        %p260 = pneg %p105
        %p261 = pneg %p102
        %p262 = pneg %p126
        %p263 = pneg %p123
        %p264 = pneg %p147
        %p265 = pneg %p144
        %p266 = pneg %p168
        %p267 = pneg %p165
        %p268 = pneg %p194
        %p269 = pneg %p191
        %s270 = sand.u32 %s181, 1
        %s271 = scalar_lea.sflag [#allocation3], %s270
        %s272 = sand.u32 %s181, 1
        %s273 = smul.addr %s272, 32
        %s274 = scalar_lea.vmem [#allocation2], %s273
        %s275 = smul.u32 4, %s21
        %p276 = scmp.lt.s32.totalorder %s275, 7
        %s277 = scalar_select %p276, %s275, 7
        %s278 = smul.addr %s277, 3
        %s279 = smul.addr %s278, 4
        %s280 = scalar_lea.vmem %s0, %s279
        %s281 = smul.u32 4, %s21
        %s282 = smul.u32 4, %s21
        %v284 = vld [vmem:[%s280] sm:$0xff]
        %v285 = vld [vmem:[%s280 + $0x8] sm:$0xf]
        %v286 = vld [vmem:[%s280 + $0xc] sm:$0xff]
        %v287 = vld [vmem:[%s280 + $0x14] sm:$0xf]
        %v288 = vld [vmem:[%s280 + $0x18] sm:$0xff]
        %v289 = vld [vmem:[%s280 + $0x20] sm:$0xf]
        %v290 = vld [vmem:[%s280 + $0x24] sm:$0xff]
        %v291 = vld [vmem:[%s280 + $0x2c] sm:$0xf]
        %v292 = vld [vmem:[%s1] sm:$0xff]
        %v293 = vld [vmem:[%s1 + $0x8] sm:$0xff]
        %v294 = vld [vmem:[%s1 + $0x10] sm:$0xff]
        %v295 = vld [vmem:[%s1 + $0x18] sm:$0xff]
        %v296 = vld [vmem:[%s1 + $0x20] sm:$0xff]
        %v297 = vld [vmem:[%s1 + $0x28] sm:$0xff]
        %v298 = vld [vmem:[%s1 + $0x30] sm:$0xff]
        %v299 = vld [vmem:[%s1 + $0x38] sm:$0xff]
        %v300 = vld [vmem:[%s1 + $0x40] sm:$0xff]
        %v301 = vld [vmem:[%s1 + $0x48] sm:$0xff]
        %v302 = vld [vmem:[%s1 + $0x50] sm:$0xff]
        %v303 = vld [vmem:[%s1 + $0x58] sm:$0xff]
        %v304 = vld [vmem:[%s1 + $0x60] sm:$0xff]
        %v305 = vld [vmem:[%s1 + $0x68] sm:$0xff]
        %v306 = vld [vmem:[%s1 + $0x70] sm:$0xff]
        %v307 = vld [vmem:[%s1 + $0x78] sm:$0xff]
        %v308 = vld [vmem:[%s1 + $0x80] sm:$0xff]
        %v309 = vld [vmem:[%s1 + $0x88] sm:$0xff]
        %v310 = vld [vmem:[%s1 + $0x90] sm:$0xff]
        %v311 = vld [vmem:[%s1 + $0x98] sm:$0xff]
        %v312 = vld [vmem:[%s1 + $0xa0] sm:$0xff]
        %v313 = vld [vmem:[%s1 + $0xa8] sm:$0xff]
        %v314 = vld [vmem:[%s1 + $0xb0] sm:$0xff]
        %v315 = vld [vmem:[%s1 + $0xb8] sm:$0xff]
        %v316 = vld [vmem:[%s1 + $0xc0] sm:$0xff]
        %v317 = vld [vmem:[%s1 + $0xc8] sm:$0xff]
        %v318 = vld [vmem:[%s1 + $0xd0] sm:$0xff]
        %v319 = vld [vmem:[%s1 + $0xd8] sm:$0xff]
        %v320 = vld [vmem:[%s1 + $0xe0] sm:$0xff]
        %v321 = vld [vmem:[%s1 + $0xe8] sm:$0xff]
        %v322 = vld [vmem:[%s1 + $0xf0] sm:$0xff]
        %v323 = vld [vmem:[%s1 + $0xf8] sm:$0xff]
        %v324 = vld [vmem:[%s1 + $0x100] sm:$0xff]
        %v325 = vld [vmem:[%s1 + $0x108] sm:$0xff]
        %v326 = vld [vmem:[%s1 + $0x110] sm:$0xff]
        %v327 = vld [vmem:[%s1 + $0x118] sm:$0xff]
        %v328 = vld [vmem:[%s1 + $0x120] sm:$0xff]
        %v329 = vld [vmem:[%s1 + $0x128] sm:$0xff]
        %v330 = vld [vmem:[%s1 + $0x130] sm:$0xff]
        %v331 = vld [vmem:[%s1 + $0x138] sm:$0xff]
        %v332 = vld [vmem:[%s1 + $0x140] sm:$0xff]
        %v333 = vld [vmem:[%s1 + $0x148] sm:$0xff]
        %v334 = vld [vmem:[%s1 + $0x150] sm:$0xff]
        %v335 = vld [vmem:[%s1 + $0x158] sm:$0xff]
        %v336 = vld [vmem:[%s1 + $0x160] sm:$0xff]
        %v337 = vld [vmem:[%s1 + $0x168] sm:$0xff]
        %v338 = vld [vmem:[%s1 + $0x170] sm:$0xff]
        %v339 = vld [vmem:[%s1 + $0x178] sm:$0xff]
        %v340 = vld [vmem:[%s2] sm:$0x3]
        %v342 = vperm.slane %v340, 0
        %v343 = vperm.slane %v340, 1
        %v354 = vunpack.c.l.b16 %v284
        %v355 = vunpack.c.h.b16 %v284
        %v356 = vunpack.c.l.b16 %v285
        %v357 = vunpack.c.l.b16 %v286
        %v358 = vunpack.c.h.b16 %v286
        %v359 = vunpack.c.l.b16 %v287
        %v360 = vunpack.c.l.b16 %v288
        %v361 = vunpack.c.h.b16 %v288
        %v362 = vunpack.c.l.b16 %v289
        %v363 = vunpack.c.l.b16 %v290
        %v364 = vunpack.c.h.b16 %v290
        %v365 = vunpack.c.l.b16 %v291
        %v366 = vpack.c.b16 %v357, %v354
        %v367 = vpack.c.b16 %v358, %v355
        %v368 = vpack.c.b16 %v359, %v356
        %v369 = vpack.c.b16 %v363, %v360
        %v370 = vpack.c.b16 %v364, %v361
        %v371 = vpack.c.b16 %v365, %v362
        %v426 = vunpack.c.l.b16 %v292
        %v427 = vunpack.c.h.b16 %v292
        %v428 = vunpack.c.l.b16 %v293
        %v429 = vunpack.c.h.b16 %v293
        %v430 = vunpack.c.l.b16 %v294
        %v431 = vunpack.c.h.b16 %v294
        %v432 = vunpack.c.l.b16 %v295
        %v433 = vunpack.c.h.b16 %v295
        %v434 = vunpack.c.l.b16 %v296
        %v435 = vunpack.c.h.b16 %v296
        %v436 = vunpack.c.l.b16 %v297
        %v437 = vunpack.c.h.b16 %v297
        %v438 = vunpack.c.l.b16 %v298
        %v439 = vunpack.c.h.b16 %v298
        %v440 = vunpack.c.l.b16 %v299
        %v441 = vunpack.c.h.b16 %v299
        %v442 = vunpack.c.l.b16 %v300
        %v443 = vunpack.c.h.b16 %v300
        %v444 = vunpack.c.l.b16 %v301
        %v445 = vunpack.c.h.b16 %v301
        %v446 = vunpack.c.l.b16 %v302
        %v447 = vunpack.c.h.b16 %v302
        %v448 = vunpack.c.l.b16 %v303
        %v449 = vunpack.c.h.b16 %v303
        %v450 = vunpack.c.l.b16 %v304
        %v451 = vunpack.c.h.b16 %v304
        %v452 = vunpack.c.l.b16 %v305
        %v453 = vunpack.c.h.b16 %v305
        %v454 = vunpack.c.l.b16 %v306
        %v455 = vunpack.c.h.b16 %v306
        %v456 = vunpack.c.l.b16 %v307
        %v457 = vunpack.c.h.b16 %v307
        %v458 = vunpack.c.l.b16 %v308
        %v459 = vunpack.c.h.b16 %v308
        %v460 = vunpack.c.l.b16 %v309
        %v461 = vunpack.c.h.b16 %v309
        %v462 = vunpack.c.l.b16 %v310
        %v463 = vunpack.c.h.b16 %v310
        %v464 = vunpack.c.l.b16 %v311
        %v465 = vunpack.c.h.b16 %v311
        %v466 = vunpack.c.l.b16 %v312
        %v467 = vunpack.c.h.b16 %v312
        %v468 = vunpack.c.l.b16 %v313
        %v469 = vunpack.c.h.b16 %v313
        %v470 = vunpack.c.l.b16 %v314
        %v471 = vunpack.c.h.b16 %v314
        %v472 = vunpack.c.l.b16 %v315
        %v473 = vunpack.c.h.b16 %v315
        %v474 = vunpack.c.l.b16 %v316
        %v475 = vunpack.c.h.b16 %v316
        %v476 = vunpack.c.l.b16 %v317
        %v477 = vunpack.c.h.b16 %v317
        %v478 = vunpack.c.l.b16 %v318
        %v479 = vunpack.c.h.b16 %v318
        %v480 = vunpack.c.l.b16 %v319
        %v481 = vunpack.c.h.b16 %v319
        %v482 = vunpack.c.l.b16 %v320
        %v483 = vunpack.c.h.b16 %v320
        %v484 = vunpack.c.l.b16 %v321
        %v485 = vunpack.c.h.b16 %v321
        %v486 = vunpack.c.l.b16 %v322
        %v487 = vunpack.c.h.b16 %v322
        %v488 = vunpack.c.l.b16 %v323
        %v489 = vunpack.c.h.b16 %v323
        %v490 = vunpack.c.l.b16 %v324
        %v491 = vunpack.c.h.b16 %v324
        %v492 = vunpack.c.l.b16 %v325
        %v493 = vunpack.c.h.b16 %v325
        %v494 = vunpack.c.l.b16 %v326
        %v495 = vunpack.c.h.b16 %v326
        %v496 = vunpack.c.l.b16 %v327
        %v497 = vunpack.c.h.b16 %v327
        %v498 = vunpack.c.l.b16 %v328
        %v499 = vunpack.c.h.b16 %v328
        %v500 = vunpack.c.l.b16 %v329
        %v501 = vunpack.c.h.b16 %v329
        %v502 = vunpack.c.l.b16 %v330
        %v503 = vunpack.c.h.b16 %v330
        %v504 = vunpack.c.l.b16 %v331
        %v505 = vunpack.c.h.b16 %v331
        %v506 = vunpack.c.l.b16 %v332
        %v507 = vunpack.c.h.b16 %v332
        %v508 = vunpack.c.l.b16 %v333
        %v509 = vunpack.c.h.b16 %v333
        %v510 = vunpack.c.l.b16 %v334
        %v511 = vunpack.c.h.b16 %v334
        %v512 = vunpack.c.l.b16 %v335
        %v513 = vunpack.c.h.b16 %v335
        %v514 = vunpack.c.l.b16 %v336
        %v515 = vunpack.c.h.b16 %v336
        %v516 = vunpack.c.l.b16 %v337
        %v517 = vunpack.c.h.b16 %v337
        %v518 = vunpack.c.l.b16 %v338
        %v519 = vunpack.c.h.b16 %v338
        %v520 = vunpack.c.l.b16 %v339
        %v521 = vunpack.c.h.b16 %v339
        %v522 = vpack.c.b16 %v428, %v426
        %v523 = vpack.c.b16 %v429, %v427
        %v524 = vpack.c.b16 %v432, %v430
        %v525 = vpack.c.b16 %v433, %v431
        %v526 = vpack.c.b16 %v436, %v434
        %v527 = vpack.c.b16 %v437, %v435
        %v528 = vpack.c.b16 %v440, %v438
        %v529 = vpack.c.b16 %v441, %v439
        %v530 = vpack.c.b16 %v444, %v442
        %v531 = vpack.c.b16 %v445, %v443
        %v532 = vpack.c.b16 %v448, %v446
        %v533 = vpack.c.b16 %v449, %v447
        %v534 = vpack.c.b16 %v452, %v450
        %v535 = vpack.c.b16 %v453, %v451
        %v536 = vpack.c.b16 %v456, %v454
        %v537 = vpack.c.b16 %v457, %v455
        %v538 = vpack.c.b16 %v460, %v458
        %v539 = vpack.c.b16 %v461, %v459
        %v540 = vpack.c.b16 %v464, %v462
        %v541 = vpack.c.b16 %v465, %v463
        %v542 = vpack.c.b16 %v468, %v466
        %v543 = vpack.c.b16 %v469, %v467
        %v544 = vpack.c.b16 %v472, %v470
        %v545 = vpack.c.b16 %v473, %v471
        %v546 = vpack.c.b16 %v476, %v474
        %v547 = vpack.c.b16 %v477, %v475
        %v548 = vpack.c.b16 %v480, %v478
        %v549 = vpack.c.b16 %v481, %v479
        %v550 = vpack.c.b16 %v484, %v482
        %v551 = vpack.c.b16 %v485, %v483
        %v552 = vpack.c.b16 %v488, %v486
        %v553 = vpack.c.b16 %v489, %v487
        %v554 = vpack.c.b16 %v492, %v490
        %v555 = vpack.c.b16 %v493, %v491
        %v556 = vpack.c.b16 %v496, %v494
        %v557 = vpack.c.b16 %v497, %v495
        %v558 = vpack.c.b16 %v500, %v498
        %v559 = vpack.c.b16 %v501, %v499
        %v560 = vpack.c.b16 %v504, %v502
        %v561 = vpack.c.b16 %v505, %v503
        %v562 = vpack.c.b16 %v508, %v506
        %v563 = vpack.c.b16 %v509, %v507
        %v564 = vpack.c.b16 %v512, %v510
        %v565 = vpack.c.b16 %v513, %v511
        %v566 = vpack.c.b16 %v516, %v514
        %v567 = vpack.c.b16 %v517, %v515
        %v568 = vpack.c.b16 %v520, %v518
        %v569 = vpack.c.b16 %v521, %v519
        %618 = vmatpush.bf16.msra.mxu0 %v536
        %619 = vmatpush.bf16.msra.mxu0 %v534
        %620 = vmatpush.bf16.msra.mxu0 %v532
        %621 = vmatpush.bf16.msra.mxu0 %v530
        %622 = vmatpush.bf16.msra.mxu0 %v528
        %623 = vmatpush.bf16.msra.mxu0 %v526
        %624 = vmatpush.bf16.msra.mxu0 %v524
        %625 = vmatpush.bf16.msra.mxu0 %v522
        %626 = vmatmul.bf16.gmra.mxu0 %v366
        %v627 = vpop.f32.mrf.mxu0
        %v628 = vadd.f32 %v342, %v627
        %v629 = vpop.f32.mrf.mxu0
        %v630 = vadd.f32 %v342, %v629
        %631 = vmatmul.bf16.gmra.mxu0 %v369
        %v632 = vpop.f32.mrf.mxu0
        %v633 = vadd.f32 %v342, %v632
        %v634 = vpop.f32.mrf.mxu0
        %v635 = vadd.f32 %v342, %v634
        %636 = vdwg.mxu0
        %637 = vmatpush.bf16.msra.mxu0 %v552
        %638 = vmatpush.bf16.msra.mxu0 %v550
        %639 = vmatpush.bf16.msra.mxu0 %v548
        %640 = vmatpush.bf16.msra.mxu0 %v546
        %641 = vmatpush.bf16.msra.mxu0 %v544
        %642 = vmatpush.bf16.msra.mxu0 %v542
        %643 = vmatpush.bf16.msra.mxu0 %v540
        %644 = vmatpush.bf16.msra.mxu0 %v538
        %645 = vmatmul.bf16.gmra.mxu0 %v367
        %v646 = vpop.f32.mrf.mxu0
        %v647 = vadd.f32 %v628, %v646
        %v648 = vpop.f32.mrf.mxu0
        %v649 = vadd.f32 %v630, %v648
        %650 = vmatmul.bf16.gmra.mxu0 %v370
        %v651 = vpop.f32.mrf.mxu0
        %v652 = vadd.f32 %v633, %v651
        %v653 = vpop.f32.mrf.mxu0
        %v654 = vadd.f32 %v635, %v653
        %655 = vdwg.mxu0
        %656 = vmatpush.bf16.msra.mxu0 %v568
        %657 = vmatpush.bf16.msra.mxu0 %v566
        %658 = vmatpush.bf16.msra.mxu0 %v564
        %659 = vmatpush.bf16.msra.mxu0 %v562
        %660 = vmatpush.bf16.msra.mxu0 %v560
        %661 = vmatpush.bf16.msra.mxu0 %v558
        %662 = vmatpush.bf16.msra.mxu0 %v556
        %663 = vmatpush.bf16.msra.mxu0 %v554
        %664 = vmatmul.bf16.gmra.mxu0 %v368
        %v665 = vpop.f32.mrf.mxu0
        %v666 = vadd.f32 %v647, %v665
        %v667 = vpop.f32.mrf.mxu0
        %v668 = vadd.f32 %v649, %v667
        %669 = vmatmul.bf16.gmra.mxu0 %v371
        %v670 = vpop.f32.mrf.mxu0
        %v671 = vadd.f32 %v652, %v670
        %v672 = vpop.f32.mrf.mxu0
        %v673 = vadd.f32 %v654, %v672
        %674 = vdwg.mxu0
        %675 = vmatpush.bf16.msra.mxu0 %v537
        %676 = vmatpush.bf16.msra.mxu0 %v535
        %677 = vmatpush.bf16.msra.mxu0 %v533
        %678 = vmatpush.bf16.msra.mxu0 %v531
        %679 = vmatpush.bf16.msra.mxu0 %v529
        %680 = vmatpush.bf16.msra.mxu0 %v527
        %681 = vmatpush.bf16.msra.mxu0 %v525
        %682 = vmatpush.bf16.msra.mxu0 %v523
        %683 = vmatmul.bf16.gmra.mxu0 %v366
        %v684 = vpop.f32.mrf.mxu0
        %v685 = vadd.f32 %v343, %v684
        %v686 = vpop.f32.mrf.mxu0
        %v687 = vadd.f32 %v343, %v686
        %688 = vmatmul.bf16.gmra.mxu0 %v369
        %v689 = vpop.f32.mrf.mxu0
        %v690 = vadd.f32 %v343, %v689
        %v691 = vpop.f32.mrf.mxu0
        %v692 = vadd.f32 %v343, %v691
        %693 = vdwg.mxu0
        %694 = vmatpush.bf16.msra.mxu0 %v553
        %695 = vmatpush.bf16.msra.mxu0 %v551
        %696 = vmatpush.bf16.msra.mxu0 %v549
        %697 = vmatpush.bf16.msra.mxu0 %v547
        %698 = vmatpush.bf16.msra.mxu0 %v545
        %699 = vmatpush.bf16.msra.mxu0 %v543
        %700 = vmatpush.bf16.msra.mxu0 %v541
        %701 = vmatpush.bf16.msra.mxu0 %v539
        %702 = vmatmul.bf16.gmra.mxu0 %v367
        %v703 = vpop.f32.mrf.mxu0
        %v704 = vadd.f32 %v685, %v703
        %v705 = vpop.f32.mrf.mxu0
        %v706 = vadd.f32 %v687, %v705
        %707 = vmatmul.bf16.gmra.mxu0 %v370
        %v708 = vpop.f32.mrf.mxu0
        %v709 = vadd.f32 %v690, %v708
        %v710 = vpop.f32.mrf.mxu0
        %v711 = vadd.f32 %v692, %v710
        %712 = vdwg.mxu0
        %713 = vmatpush.bf16.msra.mxu0 %v569
        %714 = vmatpush.bf16.msra.mxu0 %v567
        %715 = vmatpush.bf16.msra.mxu0 %v565
        %716 = vmatpush.bf16.msra.mxu0 %v563
        %717 = vmatpush.bf16.msra.mxu0 %v561
        %718 = vmatpush.bf16.msra.mxu0 %v559
        %719 = vmatpush.bf16.msra.mxu0 %v557
        %720 = vmatpush.bf16.msra.mxu0 %v555
        %721 = vmatmul.bf16.gmra.mxu0 %v368
        %v722 = vpop.f32.mrf.mxu0
        %v723 = vadd.f32 %v704, %v722
        %v724 = vpop.f32.mrf.mxu0
        %v725 = vadd.f32 %v706, %v724
        %726 = vmatmul.bf16.gmra.mxu0 %v371
        %v727 = vpop.f32.mrf.mxu0
        %v728 = vadd.f32 %v709, %v727
        %v729 = vpop.f32.mrf.mxu0
        %v730 = vadd.f32 %v711, %v729
        %731 = vdwg.mxu0
        %vm732 = vcmp.gt.f32.partialorder %v666, 0.0
        %vm733 = vcmp.gt.f32.partialorder %v723, 0.0
        %vm734 = vcmp.gt.f32.partialorder %v668, 0.0
        %vm735 = vcmp.gt.f32.partialorder %v725, 0.0
        %vm736 = vcmp.gt.f32.partialorder %v671, 0.0
        %vm737 = vcmp.gt.f32.partialorder %v728, 0.0
        %vm738 = vcmp.gt.f32.partialorder %v673, 0.0
        %vm739 = vcmp.gt.f32.partialorder %v730, 0.0
        %v740 = vmin.f32 %v666, 0.0
        %v741 = vmin.f32 %v723, 0.0
        %v742 = vmin.f32 %v668, 0.0
        %v743 = vmin.f32 %v725, 0.0
        %v744 = vmin.f32 %v671, 0.0
        %v745 = vmin.f32 %v728, 0.0
        %v746 = vmin.f32 %v673, 0.0
        %v747 = vmin.f32 %v730, 0.0
        %v748 = vmul.f32 %v740, 1.442695
        %v749 = vpow.pop %v748
        %v750 = vmul.f32 %v741, 1.442695
        %v751 = vpow.pop %v750
        %v752 = vmul.f32 %v742, 1.442695
        %v753 = vpow.pop %v752
        %v754 = vmul.f32 %v743, 1.442695
        %v755 = vpow.pop %v754
        %v756 = vmul.f32 %v744, 1.442695
        %v757 = vpow.pop %v756
        %v758 = vmul.f32 %v745, 1.442695
        %v759 = vpow.pop %v758
        %v760 = vmul.f32 %v746, 1.442695
        %v761 = vpow.pop %v760
        %v762 = vmul.f32 %v747, 1.442695
        %v763 = vpow.pop %v762
        %v764 = vsub.f32 %v749, 1.0
        %v765 = vsub.f32 %v751, 1.0
        %v766 = vsub.f32 %v753, 1.0
        %v767 = vsub.f32 %v755, 1.0
        %v768 = vsub.f32 %v757, 1.0
        %v769 = vsub.f32 %v759, 1.0
        %v770 = vsub.f32 %v761, 1.0
        %v771 = vsub.f32 %v763, 1.0
        %v772 = vsel %vm732, %v666, %v764
        %v773 = vsel %vm733, %v723, %v765
        %v774 = vsel %vm734, %v668, %v766
        %v775 = vsel %vm735, %v725, %v767
        %v776 = vsel %vm736, %v671, %v768
        %v777 = vsel %vm737, %v728, %v769
        %v778 = vsel %vm738, %v673, %v770
        %v779 = vsel %vm739, %v730, %v771
        %v780 = vpack.c.bf16 %v774, %v772
        %v781 = vpack.c.bf16 %v775, %v773
        %v782 = vpack.c.bf16 %v778, %v776
        %v783 = vpack.c.bf16 %v779, %v777
        %v784 = vld [vmem:[%s3] sm:$0xf]
        %v785 = vld [vmem:[%s3 + $0x4] sm:$0xf]
        %v786 = vld [vmem:[%s3 + $0x8] sm:$0xf]
        %v787 = vld [vmem:[%s3 + $0xc] sm:$0xf]
        %v788 = vld [vmem:[%s3 + $0x10] sm:$0xf]
        %v789 = vld [vmem:[%s3 + $0x14] sm:$0xf]
        %v790 = vld [vmem:[%s3 + $0x18] sm:$0xf]
        %v791 = vld [vmem:[%s3 + $0x1c] sm:$0xf]
        %v792 = vld [vmem:[%s3 + $0x20] sm:$0xf]
        %v793 = vld [vmem:[%s3 + $0x24] sm:$0xf]
        %v794 = vld [vmem:[%s3 + $0x28] sm:$0xf]
        %v795 = vld [vmem:[%s3 + $0x2c] sm:$0xf]
        %v796 = vld [vmem:[%s3 + $0x30] sm:$0xf]
        %v797 = vld [vmem:[%s3 + $0x34] sm:$0xf]
        %v798 = vld [vmem:[%s3 + $0x38] sm:$0xf]
        %v799 = vld [vmem:[%s3 + $0x3c] sm:$0xf]
        %v800 = vld [vmem:[%s3 + $0x40] sm:$0x3]
        %v801 = vld [vmem:[%s4] sm:$0x1]
        %v803 = vperm.slane %v801, 0
        %v822 = vunpack.c.l.b16 %v784
        %v823 = vunpack.c.l.b16 %v785
        %v824 = vunpack.c.l.b16 %v786
        %v825 = vunpack.c.l.b16 %v787
        %v826 = vunpack.c.l.b16 %v788
        %v827 = vunpack.c.l.b16 %v789
        %v828 = vunpack.c.l.b16 %v790
        %v829 = vunpack.c.l.b16 %v791
        %v830 = vunpack.c.l.b16 %v792
        %v831 = vunpack.c.l.b16 %v793
        %v832 = vunpack.c.l.b16 %v794
        %v833 = vunpack.c.l.b16 %v795
        %v834 = vunpack.c.l.b16 %v796
        %v835 = vunpack.c.l.b16 %v797
        %v836 = vunpack.c.l.b16 %v798
        %v837 = vunpack.c.l.b16 %v799
        %v838 = vunpack.c.l.b16 %v800
        %v839 = vpack.c.b16 %v823, %v822
        %v840 = vpack.c.b16 %v825, %v824
        %v841 = vpack.c.b16 %v827, %v826
        %v842 = vpack.c.b16 %v829, %v828
        %v843 = vpack.c.b16 %v831, %v830
        %v844 = vpack.c.b16 %v833, %v832
        %v845 = vpack.c.b16 %v835, %v834
        %v846 = vpack.c.b16 %v837, %v836
        %v847 = vpack.c.b16 %v838, %v838
        %vm856 = vcmask 31744
        %v858 = vsel %vm856, %v781, 0
        %v861 = vsel %vm856, %v783, 0
        %vm863 = vcmask 1041408
        %v865 = vsel %vm863, %v847, 0
        %867 = vmatpush.bf16.msra.mxu0 %v846
        %868 = vmatpush.bf16.msra.mxu0 %v845
        %869 = vmatpush.bf16.msra.mxu0 %v844
        %870 = vmatpush.bf16.msra.mxu0 %v843
        %871 = vmatpush.bf16.msra.mxu0 %v842
        %872 = vmatpush.bf16.msra.mxu0 %v841
        %873 = vmatpush.bf16.msra.mxu0 %v840
        %874 = vmatpush.bf16.msra.mxu0 %v839
        %875 = vmatmul.bf16.gmra.mxu0 %v780
        %v876 = vpop.f32.mrf.mxu0
        %v877 = vadd.f32 %v803, %v876
        %v878 = vpop.f32.mrf.mxu0
        %v879 = vadd.f32 %v803, %v878
        %880 = vmatmul.bf16.gmra.mxu0 %v782
        %v881 = vpop.f32.mrf.mxu0
        %v882 = vadd.f32 %v803, %v881
        %v883 = vpop.f32.mrf.mxu0
        %v884 = vadd.f32 %v803, %v883
        %885 = vdwg.mxu0
        %886 = vmatpush.bf16.msra.mxu0 0
        %887 = vmatpush.bf16.msra.mxu0 0
        %888 = vmatpush.bf16.msra.mxu0 0
        %889 = vmatpush.bf16.msra.mxu0 0
        %890 = vmatpush.bf16.msra.mxu0 0
        %891 = vmatpush.bf16.msra.mxu0 0
        %892 = vmatpush.bf16.msra.mxu0 0
        %893 = vmatpush.bf16.msra.mxu0 %v865
        %894 = vmatmul.bf16.gmra.mxu0 %v858
        %v895 = vpop.f32.mrf.mxu0
        %v896 = vadd.f32 %v877, %v895
        %v897 = vpop.f32.mrf.mxu0
        %v898 = vadd.f32 %v879, %v897
        %899 = vmatmul.bf16.gmra.mxu0 %v861
        %v900 = vpop.f32.mrf.mxu0
        %v901 = vadd.f32 %v882, %v900
        %v902 = vpop.f32.mrf.mxu0
        %v903 = vadd.f32 %v884, %v902
        %904 = vdwg.mxu0
        %vm905 = vcmp.gt.f32.partialorder %v896, 0.0
        %vm906 = vcmp.gt.f32.partialorder %v898, 0.0
        %vm907 = vcmp.gt.f32.partialorder %v901, 0.0
        %vm908 = vcmp.gt.f32.partialorder %v903, 0.0
        %v909 = vmin.f32 %v896, 0.0
        %v910 = vmin.f32 %v898, 0.0
        %v911 = vmin.f32 %v901, 0.0
        %v912 = vmin.f32 %v903, 0.0
        %v913 = vmul.f32 %v909, 1.442695
        %v914 = vpow.pop %v913
        %v915 = vmul.f32 %v910, 1.442695
        %v916 = vpow.pop %v915
        %v917 = vmul.f32 %v911, 1.442695
        %v918 = vpow.pop %v917
        %v919 = vmul.f32 %v912, 1.442695
        %v920 = vpow.pop %v919
        %v921 = vsub.f32 %v914, 1.0
        %v922 = vsub.f32 %v916, 1.0
        %v923 = vsub.f32 %v918, 1.0
        %v924 = vsub.f32 %v920, 1.0
        %v925 = vsel %vm905, %v896, %v921
        %v926 = vsel %vm906, %v898, %v922
        %v927 = vsel %vm907, %v901, %v923
        %v928 = vsel %vm908, %v903, %v924
        %v929 = vpack.c.bf16 %v926, %v925
        %v930 = vpack.c.bf16 %v928, %v927
        %v931 = vld [vmem:[%s5] sm:$0xf]
        %v932 = vld [vmem:[%s5 + $0x4] sm:$0xf]
        %v933 = vld [vmem:[%s5 + $0x8] sm:$0xf]
        %v934 = vld [vmem:[%s5 + $0xc] sm:$0xf]
        %v935 = vld [vmem:[%s5 + $0x10] sm:$0xf]
        %v936 = vld [vmem:[%s5 + $0x14] sm:$0xf]
        %v937 = vld [vmem:[%s5 + $0x18] sm:$0xf]
        %v938 = vld [vmem:[%s5 + $0x1c] sm:$0xf]
        %v939 = vld [vmem:[%s5 + $0x20] sm:$0xf]
        %v940 = vld [vmem:[%s6] sm:$0x1]
        %v942 = vperm.slane %v940, 0
        %v953 = vunpack.c.l.b16 %v931
        %v954 = vunpack.c.l.b16 %v932
        %v955 = vunpack.c.l.b16 %v933
        %v956 = vunpack.c.l.b16 %v934
        %v957 = vunpack.c.l.b16 %v935
        %v958 = vunpack.c.l.b16 %v936
        %v959 = vunpack.c.l.b16 %v937
        %v960 = vunpack.c.l.b16 %v938
        %v961 = vunpack.c.l.b16 %v939
        %v962 = vpack.c.b16 %v954, %v953
        %v963 = vpack.c.b16 %v956, %v955
        %v964 = vpack.c.b16 %v958, %v957
        %v965 = vpack.c.b16 %v960, %v959
        %v966 = vpack.c.b16 %v961, %v961
        %vm971 = vcmask 588800
        %v973 = vsel %vm971, %v929, 0
        %v976 = vsel %vm971, %v930, 0
        %vm978 = vcmask 1043456
        %v980 = vsel %vm978, %v966, 0
        %982 = vmatpush.bf16.msra.mxu0 0
        %983 = vmatpush.bf16.msra.mxu0 0
        %984 = vmatpush.bf16.msra.mxu0 0
        %985 = vmatpush.bf16.msra.mxu0 %v980
        %986 = vmatpush.bf16.msra.mxu0 %v965
        %987 = vmatpush.bf16.msra.mxu0 %v964
        %988 = vmatpush.bf16.msra.mxu0 %v963
        %989 = vmatpush.bf16.msra.mxu0 %v962
        %990 = vmatmul.bf16.gmra.mxu0 %v973
        %v991 = vpop.f32.mrf.mxu0
        %v992 = vadd.f32 %v942, %v991
        %v993 = vpop.f32.mrf.mxu0
        %v994 = vadd.f32 %v942, %v993
        %995 = vmatmul.bf16.gmra.mxu0 %v976
        %v996 = vpop.f32.mrf.mxu0
        %v997 = vadd.f32 %v942, %v996
        %v998 = vpop.f32.mrf.mxu0
        %v999 = vadd.f32 %v942, %v998
        %1000 = vdwg.mxu0
        %1001 = vmax.xlane.f32.xlu0 %v992
        %v1002 = vpop.xlane.xlu0 %1001
        %1003 = vmax.xlane.f32.xlu0 %v994
        %v1004 = vpop.xlane.xlu0 %1003
        %1005 = vmax.xlane.f32.xlu0 %v997
        %v1006 = vpop.xlane.xlu0 %1005
        %1007 = vmax.xlane.f32.xlu0 %v999
        %v1008 = vpop.xlane.xlu0 %1007
        %v1009 = vsub.f32 %v992, %v1002
        %v1010 = vsub.f32 %v994, %v1004
        %v1011 = vsub.f32 %v997, %v1006
        %v1012 = vsub.f32 %v999, %v1008
        %v1013 = vmul.f32 %v1009, 1.442695
        %v1014 = vpow.pop %v1013
        %v1015 = vmul.f32 %v1010, 1.442695
        %v1016 = vpow.pop %v1015
        %v1017 = vmul.f32 %v1011, 1.442695
        %v1018 = vpow.pop %v1017
        %v1019 = vmul.f32 %v1012, 1.442695
        %v1020 = vpow.pop %v1019
        %1021 = vadd.xlane.f32.xlu0 %v1014
        %v1022 = vpop.xlane.xlu0 %1021
        %1023 = vadd.xlane.f32.xlu0 %v1016
        %v1024 = vpop.xlane.xlu0 %1023
        %1025 = vadd.xlane.f32.xlu0 %v1018
        %v1026 = vpop.xlane.xlu0 %1025
        %1027 = vadd.xlane.f32.xlu0 %v1020
        %v1028 = vpop.xlane.xlu0 %1027
        %v1029 = vrcp.pop %v1022
        %v1030 = vrcp.pop %v1024
        %v1031 = vrcp.pop %v1026
        %v1032 = vrcp.pop %v1028
        %v1033 = vmul.f32 %v1014, %v1029
        %v1034 = vmul.f32 %v1016, %v1030
        %v1035 = vmul.f32 %v1018, %v1031
        %v1036 = vmul.f32 %v1020, %v1032
        %1037 = vst [vmem:[%s274] sm:$0xff] %v1033
        %1038 = vst [vmem:[%s274 + $0x8] sm:$0xff] %v1034
        %1039 = vst [vmem:[%s274 + $0x10] sm:$0xff] %v1035
        %1040 = vst [vmem:[%s274 + $0x18] sm:$0xff] %v1036
        %s1041 = sand.u32 %s181, 1
        %s1042 = scalar_lea.sflag [#allocation3], %s1041
        %s1043 = sand.u32 %s181, 1
        %s1044 = smul.addr %s1043, 32
        %s1045 = scalar_lea.vmem [#allocation2], %s1044
        // Predicated region
        $region49: #{tpu_custom_call.1} parent=47 // pred_check
          %p1046 = pneg %p191
        $region50: #{tpu_custom_call.1} parent=47 // pred_check_branch
          %1048 = sbr.rel (%p1046) target = $region52
        $region51: #{tpu_custom_call.1} parent=47 // pred_region
          %s1049 = smul.u32 4, %s21
          %1051 = vsyncadd %s1042, 0
          %s1052 = smul.addr %s1049, 8
          %s1053 = scalar_lea.hbm %s7, %s1052
          %s1054 = sshll.u32 %s1045, 4
          %s1055 = int_to_ptr.vmem [resolvable:$true] %s1054
          %s1056 = sshll.u32 %s1053, 4
          %s1057 = int_to_ptr.hbm [resolvable:$true] %s1056
          %1062 = dma.vmem_to_hbm [thread:$0]  %s1055, 512, %s1057, %s1042, 128, 128, 8
        $region52: #{tpu_custom_call.1} parent=47 // pred_fallthru
          _
      $region48: #{tpu_custom_call.1} parent=5 // pred_fallthru
        _
      %p1063 = scmp.le.s32.totalorder 2, %s16
      // Predicated region
      $region53: #{tpu_custom_call.1} parent=5 // pred_check
        %p1064 = pneg %p1063
      $region54: #{tpu_custom_call.1} parent=5 // pred_check_branch
        %1066 = sbr.rel (%p1064) target = $region56
      $region55: #{tpu_custom_call.1} parent=5 // pred_region
        %s1067 = ssub.s32 %s16, 2
        // Predicated region
        $region57: #{tpu_custom_call.1} parent=55 // pred_check
          %p1068 = pneg %p197
        $region58: #{tpu_custom_call.1} parent=55 // pred_check_branch
          %1070 = sbr.rel (%p1068) target = $region60
        $region59: #{tpu_custom_call.1} parent=55 // pred_region
          %s1071 = sand.u32 %s182, 1
          %s1072 = scalar_lea.sflag [#allocation3], %s1071
          %s1073 = sand.u32 %s182, 1
          %s1074 = smul.addr %s1073, 32
          %s1075 = scalar_lea.vmem [#allocation2], %s1074
          %1077 = dma.done %s1072, 512
        $region60: #{tpu_custom_call.1} parent=55 // pred_fallthru
          _
      $region56: #{tpu_custom_call.1} parent=5 // pred_fallthru
        _
    $region6: #{tpu_custom_call.1} parent=1 // loop_footer
      %s20 = sadd.s32 1, %s16
    $region7: #{tpu_custom_call.1} parent=1 // loop_footer_branch
      %15 = sbr.rel target = $region3
    $region8: #{tpu_custom_call.1} parent=1 // loop_exit
      _
    %1078 = vsyncpa [#allocation3], 1
    %s1079 = scalar_lea.sflag [#allocation3], 1
    %1080 = vsyncpa %s1079, 1

</llo_original>
